<compile_context>
chip_gen: v7x
topology: tpu7x:2x2x1
jax: 0.10.0
libtpu: 0.0.40
codegen_flags: <defaults>
</compile_context>

<pallas_src>
import functools

import jax
import jax.numpy as jnp
from jax.experimental import pallas as pl
from jax.experimental.pallas import tpu as pltpu


# ----------------------------- Pallas kernel --------------------------------
def _decoder_kernel(ids_ref, h0_ref, c0_ref,
                    emb_gates_ref, whh_ref, w_act_ref, w_tgt_ref, ball_ref,
                    out_ref, *, hidden, a_size, t_size):
    """Fused: (folded) embedding gather + 2 LSTM steps (PyTorch gate order
    i,f,g,o) + both FC heads, written to one lane-dense slab.

    ids        : (2B, 1) int32 = [action ids | target ids + Va]
    h0/c0      : (B, H) f32 initial LSTM state
    emb_gates  : (Va+Vt, 4H) bf16 = [act_emb; tgt_emb] @ W_ih^T (folded offline)
    whh        : (H, 4H) bf16     w_act : (H, A) bf16     w_tgt : (H, T) bf16
    ball       : (1, 4H + A + T) f32 = [b_ih+b_hh | b_act | b_tgt]
    out        : (B, PAD) f32 slab = [pred_action | pred_target | h_n | c_n | 0]
    """
    H = hidden
    B = h0_ref.shape[0]
    V = emb_gates_ref.shape[0]          # Va + Vt
    mxu_dt = whh_ref.dtype

    # --- folded embedding gather + input-side gate pre-activation ------------
    # Single one-hot selector over the combined vocab; one MXU push yields the
    # x@W_ih contribution for BOTH timesteps at once.
    # NOTE: out-of-range ids silently select a zero row (PyTorch Embedding
    # would raise); clamp / pl.debug_check upstream if ids are untrusted.
    onehot = (jax.lax.broadcasted_iota(jnp.int32, (2 * B, V), 1)
              == ids_ref[...]).astype(mxu_dt)                           # (2B, V)
    b_lstm = ball_ref[:, :4 * H]                                        # (1, 4H)
    gx_all = (jnp.dot(onehot, emb_gates_ref[...],
                      preferred_element_type=jnp.float32)
              + b_lstm)                                                 # (2B, 4H)

    def lstm_step(gx, h, c):
        gates = gx + jnp.dot(h.astype(mxu_dt), whh_ref[...],
                             preferred_element_type=jnp.float32)        # (B, 4H)
        sig = jax.nn.sigmoid(gates)   # one full-width EUP pass
        tnh = jnp.tanh(gates)         # one full-width EUP pass
        i = sig[:, 0 * H:1 * H]
        f = sig[:, 1 * H:2 * H]
        g = tnh[:, 2 * H:3 * H]
        o = sig[:, 3 * H:4 * H]
        c_new = f * c + i * g
        h_new = o * jnp.tanh(c_new)
        return h_new, c_new

    h0 = h0_ref[...]
    c0 = c0_ref[...]

    # step 1 consumes the action embedding row of gx_all
    h1, c1 = lstm_step(gx_all[:B], h0, c0)

    # action head issued immediately after h1: its MXU push / result drain
    # overlaps step-2's h@W_hh and gate EUP work instead of sitting on the tail.
    b_act = ball_ref[:, 4 * H:4 * H + a_size]                           # (1, A)
    pred_action = (jnp.dot(h1.astype(mxu_dt), w_act_ref[...],
                           preferred_element_type=jnp.float32)
                   + b_act)                                             # (B, A)

    # step 2 consumes the target embedding row of gx_all
    h2, c2 = lstm_step(gx_all[B:], h1, c1)

    b_tgt = ball_ref[:, 4 * H + a_size:4 * H + a_size + t_size]         # (1, T)
    pred_target = (jnp.dot(h2.astype(mxu_dt), w_tgt_ref[...],
                           preferred_element_type=jnp.float32)
                   + b_tgt)                                             # (B, T)

    # --- single lane-dense output slab ---------------------------------------
    pad = out_ref.shape[1] - (a_size + t_size + 2 * H)
    pieces = [pred_action, pred_target, h2, c2]
    if pad > 0:
        pieces.append(jnp.zeros((B, pad), jnp.float32))
    out_ref[...] = jnp.concatenate(pieces, axis=1).astype(out_ref.dtype)


# ---------------------- one-time parameter preparation ----------------------
def prepare_params(params):
    """Pre-fold / transpose / cast weights ONCE so the per-call trace is only
    id packing + the pallas_call (plus trivial h_n/c_n slicing)."""
    H = params["w_hh"].shape[1]
    A = params["w_act"].shape[0]
    T = params["w_tgt"].shape[0]
    Va = params["actions_emb"].shape[0]
    mxu_dt = jnp.bfloat16  # MXU-side operands; gate math stays f32 (v5e VPU/EUP)

    # Fold both embedding tables through W_ih in f32, cast to bf16 LAST.
    emb_all = jnp.concatenate([params["actions_emb"],
                               params["targets_emb"]], axis=0)          # (Va+Vt, E)
    emb_gates = (emb_all @ params["w_ih"].T).astype(mxu_dt)             # (Va+Vt, 4H)

    b_all = jnp.concatenate([
        params["b_ih"] + params["b_hh"],       # (4H,) folded LSTM bias
        params["b_act"],                       # (A,)
        params["b_tgt"],                       # (T,)
    ]).reshape(1, 4 * H + A + T).astype(jnp.float32)

    return {
        "emb_gates": emb_gates,                                         # (Va+Vt, 4H)
        "whh_t": params["w_hh"].T.astype(mxu_dt),                       # (H, 4H)
        "w_act_t": params["w_act"].T.astype(mxu_dt),                    # (H, A)
        "w_tgt_t": params["w_tgt"].T.astype(mxu_dt),                    # (H, T)
        "b_all": b_all,                                                 # (1, 4H+A+T)
        "dims": (H, A, T, Va),
    }


# ------------------------------ wrapper --------------------------------------
def decoder_forward(prepped, action, target, h_n, c_n):
    """Mirrors Decoder.forward(action, target, h_n, c_n).

    action, target : int32 (B, 1) token ids
    h_n, c_n       : float32 (1, B, H)
    returns (pred_action (B, A), pred_target (B, T), h_n (1,B,H), c_n (1,B,H))
    """
    H, A, T, Va = prepped["dims"]
    B = action.shape[0]
    out_w = A + T + 2 * H
    pad_w = ((out_w + 127) // 128) * 128   # lane-dense output slab width

    # Combined, offset ids: one (2B, 1) operand, one iota+compare in-kernel.
    ids_all = jnp.concatenate([action.astype(jnp.int32),
                               target.astype(jnp.int32) + Va], axis=0)  # (2B, 1)

    kernel = functools.partial(_decoder_kernel, hidden=H, a_size=A, t_size=T)
    vmem = pl.BlockSpec(memory_space=pltpu.MemorySpace.VMEM)

    slab = pl.pallas_call(
        kernel,
        out_shape=jax.ShapeDtypeStruct((B, pad_w), jnp.float32),
        in_specs=[vmem] * 8,
        out_specs=vmem,
    )(ids_all, h_n[0], c_n[0],
      prepped["emb_gates"], prepped["whh_t"],
      prepped["w_act_t"], prepped["w_tgt_t"], prepped["b_all"])

    pred_action = slab[:, :A]
    pred_target = slab[:, A:A + T]
    h_new = slab[:, A + T:A + T + H][None, :, :]
    c_new = slab[:, A + T + H:A + T + 2 * H][None, :, :]
    # TODO(synk): if used inside an autoregressive decode loop, fuse all steps
    # into one pallas_call with grid=(num_steps,), weights VMEM-resident via
    # constant-index BlockSpecs, ids via PrefetchScalarGridSpec, h/c carried in
    # VMEM scratch; and when B is batched up on v7x, add a 'parallel' batch
    # grid axis so both TensorCores are used.
    return pred_action, pred_target, h_new, c_new


# ----------------------- deterministic parameter init ------------------------
def init_params(key, actions_size, targets_size, embedding_dim, hidden_dim):
    keys = jax.random.split(key, 10)
    s = 0.1
    return {
        "actions_emb": s * jax.random.normal(keys[0], (actions_size, embedding_dim), jnp.float32),
        "targets_emb": s * jax.random.normal(keys[1], (targets_size, embedding_dim), jnp.float32),
        "w_ih": s * jax.random.normal(keys[2], (4 * hidden_dim, embedding_dim), jnp.float32),
        "w_hh": s * jax.random.normal(keys[3], (4 * hidden_dim, hidden_dim), jnp.float32),
        "b_ih": s * jax.random.normal(keys[4], (4 * hidden_dim,), jnp.float32),
        "b_hh": s * jax.random.normal(keys[5], (4 * hidden_dim,), jnp.float32),
        "w_act": s * jax.random.normal(keys[6], (actions_size, hidden_dim), jnp.float32),
        "b_act": s * jax.random.normal(keys[7], (actions_size,), jnp.float32),
        "w_tgt": s * jax.random.normal(keys[8], (targets_size, hidden_dim), jnp.float32),
        "b_tgt": s * jax.random.normal(keys[9], (targets_size,), jnp.float32),
    }


if __name__ == "__main__":
    B = 8
    actions_size = 16
    targets_size = 16
    embedding_dim = 32
    hidden_dim = 32

    key = jax.random.PRNGKey(0)
    k_params, k_act, k_tgt, k_h, k_c = jax.random.split(key, 5)

    params = init_params(k_params, actions_size, targets_size, embedding_dim, hidden_dim)
    prepped = prepare_params(params)   # one-time weight folding / layout / dtype prep

    action = jax.random.randint(k_act, (B, 1), 0, actions_size, dtype=jnp.int32)
    target = jax.random.randint(k_tgt, (B, 1), 0, targets_size, dtype=jnp.int32)
    h_n = 0.1 * jax.random.normal(k_h, (1, B, hidden_dim), jnp.float32)
    c_n = 0.1 * jax.random.normal(k_c, (1, B, hidden_dim), jnp.float32)

    pred_action, pred_target, h_out, c_out = decoder_forward(prepped, action, target, h_n, c_n)
    jax.block_until_ready((pred_action, pred_target, h_out, c_out))

    assert pred_action.shape == (B, actions_size)
    assert pred_target.shape == (B, targets_size)
    assert h_out.shape == (1, B, hidden_dim)
    assert c_out.shape == (1, B, hidden_dim)
    print("KERNEL_OK")
</pallas_src>

<mosaic_0001>
module attributes {stable_mosaic.version = 11 : i64} {
  func.func @_decoder_kernel(%arg0: memref<16x1xi32, #tpu.memory_space<vmem>>, %arg1: memref<8x32xf32, #tpu.memory_space<vmem>>, %arg2: memref<8x32xf32, #tpu.memory_space<vmem>>, %arg3: memref<32x128xbf16, #tpu.memory_space<vmem>>, %arg4: memref<32x128xbf16, #tpu.memory_space<vmem>>, %arg5: memref<32x16xbf16, #tpu.memory_space<vmem>>, %arg6: memref<32x16xbf16, #tpu.memory_space<vmem>>, %arg7: memref<1x160xf32, #tpu.memory_space<vmem>>, %arg8: memref<8x128xf32, #tpu.memory_space<vmem>>) attributes {dimension_semantics = [], scalar_prefetch = 0 : i64, scratch_operands = 0 : i64, tpu.core_type = #tpu.core_type<tc>} {
    %0 = tpu.iota {dimensions = array<i32: 1>} : vector<16x32xi32>
    %c0 = arith.constant 0 : index
    %c0_0 = arith.constant 0 : index
    %1 = vector.load %arg0[%c0, %c0_0] : memref<16x1xi32, #tpu.memory_space<vmem>>, vector<16x1xi32>
    %2 = vector.broadcast %1 : vector<16x1xi32> to vector<16x32xi32>
    %3 = arith.cmpi eq, %0, %2 : vector<16x32xi32>
    %4 = arith.extui %3 : vector<16x32xi1> to vector<16x32xi32>
    %5 = arith.sitofp %4 : vector<16x32xi32> to vector<16x32xf32>
    %6 = arith.truncf %5 : vector<16x32xf32> to vector<16x32xbf16>
    %c0_1 = arith.constant 0 : index
    %c0_2 = arith.constant 0 : index
    %7 = vector.load %arg7[%c0_1, %c0_2] : memref<1x160xf32, #tpu.memory_space<vmem>>, vector<1x128xf32>
    %c0_3 = arith.constant 0 : index
    %c0_4 = arith.constant 0 : index
    %8 = vector.load %arg3[%c0_3, %c0_4] : memref<32x128xbf16, #tpu.memory_space<vmem>>, vector<32x128xbf16>
    %cst = arith.constant dense<0.000000e+00> : vector<16x128xf32>
    %9 = tpu.matmul %6, %8, %cst {dimension_numbers = #tpu.dot_dimension_numbers<[1], [0], [0], [1], [0, 0, 1, 1], [], []>} : vector<16x32xbf16>, vector<32x128xbf16>, vector<16x128xf32> -> vector<16x128xf32>
    %10 = vector.broadcast %7 : vector<1x128xf32> to vector<16x128xf32>
    %11 = arith.addf %9, %10 : vector<16x128xf32>
    %c0_5 = arith.constant 0 : index
    %c0_6 = arith.constant 0 : index
    %12 = vector.load %arg1[%c0_5, %c0_6] : memref<8x32xf32, #tpu.memory_space<vmem>>, vector<8x32xf32>
    %c0_7 = arith.constant 0 : index
    %c0_8 = arith.constant 0 : index
    %13 = vector.load %arg2[%c0_7, %c0_8] : memref<8x32xf32, #tpu.memory_space<vmem>>, vector<8x32xf32>
    %14 = vector.extract_strided_slice %11 {offsets = [0, 0], sizes = [8, 128], strides = [1, 1]} : vector<16x128xf32> to vector<8x128xf32>
    %15 = arith.truncf %12 : vector<8x32xf32> to vector<8x32xbf16>
    %c0_9 = arith.constant 0 : index
    %c0_10 = arith.constant 0 : index
    %16 = vector.load %arg4[%c0_9, %c0_10] : memref<32x128xbf16, #tpu.memory_space<vmem>>, vector<32x128xbf16>
    %cst_11 = arith.constant dense<0.000000e+00> : vector<8x128xf32>
    %17 = tpu.matmul %15, %16, %cst_11 {dimension_numbers = #tpu.dot_dimension_numbers<[1], [0], [0], [1], [0, 0, 1, 1], [], []>} : vector<8x32xbf16>, vector<32x128xbf16>, vector<8x128xf32> -> vector<8x128xf32>
    %18 = arith.addf %14, %17 : vector<8x128xf32>
    %19 = arith.negf %18 : vector<8x128xf32>
    %20 = math.exp %19 : vector<8x128xf32>
    %cst_12 = arith.constant 1.000000e+00 : f32
    %21 = vector.broadcast %cst_12 : f32 to vector<8x128xf32>
    %22 = arith.addf %21, %20 : vector<8x128xf32>
    %23 = arith.divf %21, %22 : vector<8x128xf32>
    %24 = math.tanh %18 : vector<8x128xf32>
    %25 = vector.extract_strided_slice %23 {offsets = [0, 0], sizes = [8, 32], strides = [1, 1]} : vector<8x128xf32> to vector<8x32xf32>
    %26 = vector.extract_strided_slice %23 {offsets = [0, 32], sizes = [8, 32], strides = [1, 1]} : vector<8x128xf32> to vector<8x32xf32>
    %27 = vector.extract_strided_slice %24 {offsets = [0, 64], sizes = [8, 32], strides = [1, 1]} : vector<8x128xf32> to vector<8x32xf32>
    %28 = vector.extract_strided_slice %23 {offsets = [0, 96], sizes = [8, 32], strides = [1, 1]} : vector<8x128xf32> to vector<8x32xf32>
    %29 = arith.mulf %26, %13 : vector<8x32xf32>
    %30 = arith.mulf %25, %27 : vector<8x32xf32>
    %31 = arith.addf %29, %30 : vector<8x32xf32>
    %32 = math.tanh %31 : vector<8x32xf32>
    %33 = arith.mulf %28, %32 : vector<8x32xf32>
    %c0_13 = arith.constant 0 : index
    %c128 = arith.constant 128 : index
    %34 = vector.load %arg7[%c0_13, %c128] : memref<1x160xf32, #tpu.memory_space<vmem>>, vector<1x16xf32>
    %35 = arith.truncf %33 : vector<8x32xf32> to vector<8x32xbf16>
    %c0_14 = arith.constant 0 : index
    %c0_15 = arith.constant 0 : index
    %36 = vector.load %arg5[%c0_14, %c0_15] : memref<32x16xbf16, #tpu.memory_space<vmem>>, vector<32x16xbf16>
    %cst_16 = arith.constant dense<0.000000e+00> : vector<8x16xf32>
    %37 = tpu.matmul %35, %36, %cst_16 {dimension_numbers = #tpu.dot_dimension_numbers<[1], [0], [0], [1], [0, 0, 1, 1], [], []>} : vector<8x32xbf16>, vector<32x16xbf16>, vector<8x16xf32> -> vector<8x16xf32>
    %38 = vector.broadcast %34 : vector<1x16xf32> to vector<8x16xf32>
    %39 = arith.addf %37, %38 : vector<8x16xf32>
    %40 = vector.extract_strided_slice %11 {offsets = [8, 0], sizes = [8, 128], strides = [1, 1]} : vector<16x128xf32> to vector<8x128xf32>
    %41 = arith.truncf %33 : vector<8x32xf32> to vector<8x32xbf16>
    %c0_17 = arith.constant 0 : index
    %c0_18 = arith.constant 0 : index
    %42 = vector.load %arg4[%c0_17, %c0_18] : memref<32x128xbf16, #tpu.memory_space<vmem>>, vector<32x128xbf16>
    %cst_19 = arith.constant dense<0.000000e+00> : vector<8x128xf32>
    %43 = tpu.matmul %41, %42, %cst_19 {dimension_numbers = #tpu.dot_dimension_numbers<[1], [0], [0], [1], [0, 0, 1, 1], [], []>} : vector<8x32xbf16>, vector<32x128xbf16>, vector<8x128xf32> -> vector<8x128xf32>
    %44 = arith.addf %40, %43 : vector<8x128xf32>
    %45 = arith.negf %44 : vector<8x128xf32>
    %46 = math.exp %45 : vector<8x128xf32>
    %cst_20 = arith.constant 1.000000e+00 : f32
    %47 = vector.broadcast %cst_20 : f32 to vector<8x128xf32>
    %48 = arith.addf %47, %46 : vector<8x128xf32>
    %49 = arith.divf %47, %48 : vector<8x128xf32>
    %50 = math.tanh %44 : vector<8x128xf32>
    %51 = vector.extract_strided_slice %49 {offsets = [0, 0], sizes = [8, 32], strides = [1, 1]} : vector<8x128xf32> to vector<8x32xf32>
    %52 = vector.extract_strided_slice %49 {offsets = [0, 32], sizes = [8, 32], strides = [1, 1]} : vector<8x128xf32> to vector<8x32xf32>
    %53 = vector.extract_strided_slice %50 {offsets = [0, 64], sizes = [8, 32], strides = [1, 1]} : vector<8x128xf32> to vector<8x32xf32>
    %54 = vector.extract_strided_slice %49 {offsets = [0, 96], sizes = [8, 32], strides = [1, 1]} : vector<8x128xf32> to vector<8x32xf32>
    %55 = arith.mulf %52, %31 : vector<8x32xf32>
    %56 = arith.mulf %51, %53 : vector<8x32xf32>
    %57 = arith.addf %55, %56 : vector<8x32xf32>
    %58 = math.tanh %57 : vector<8x32xf32>
    %59 = arith.mulf %54, %58 : vector<8x32xf32>
    %c0_21 = arith.constant 0 : index
    %c144 = arith.constant 144 : index
    %60 = vector.load %arg7[%c0_21, %c144] : memref<1x160xf32, #tpu.memory_space<vmem>>, vector<1x16xf32>
    %61 = arith.truncf %59 : vector<8x32xf32> to vector<8x32xbf16>
    %c0_22 = arith.constant 0 : index
    %c0_23 = arith.constant 0 : index
    %62 = vector.load %arg6[%c0_22, %c0_23] : memref<32x16xbf16, #tpu.memory_space<vmem>>, vector<32x16xbf16>
    %cst_24 = arith.constant dense<0.000000e+00> : vector<8x16xf32>
    %63 = tpu.matmul %61, %62, %cst_24 {dimension_numbers = #tpu.dot_dimension_numbers<[1], [0], [0], [1], [0, 0, 1, 1], [], []>} : vector<8x32xbf16>, vector<32x16xbf16>, vector<8x16xf32> -> vector<8x16xf32>
    %64 = vector.broadcast %60 : vector<1x16xf32> to vector<8x16xf32>
    %65 = arith.addf %63, %64 : vector<8x16xf32>
    %cst_25 = arith.constant 0.000000e+00 : f32
    %66 = vector.broadcast %cst_25 : f32 to vector<8x32xf32>
    %67 = tpu.concatenate %39, %65, %59, %57, %66 in 1 : vector<8x16xf32>, vector<8x16xf32>, vector<8x32xf32>, vector<8x32xf32>, vector<8x32xf32> -> vector<8x128xf32>
    %c0_26 = arith.constant 0 : index
    %c0_27 = arith.constant 0 : index
    %68 = vector.load %arg8[%c0_26, %c0_27] : memref<8x128xf32, #tpu.memory_space<vmem>>, vector<8x128xf32>
    tpu.vector_store %arg8[%c0_26, %c0_27], %67 {strides = array<i32>} : memref<8x128xf32, #tpu.memory_space<vmem>>, vector<8x128xf32>,
    return
  }
}

</mosaic_0001>

<llo_original>
// kernel: tpu_custom_call.1
$region0: #{tpu_custom_call.1}
  #allocation0 [shape = 'u32[]', space=smem, size = 0x4, offset = 0x4, fixed_abs, tag = 'smem constant byte address 0x4 - core index']
  #allocation1 [shape = 'u32[144,128]{1,0:T(1,128)}', space=vmem, size = 0x12000, scoped, tag = 'internal scratch']
  %s0 = inlined_call_operand.vmem [shape: s32[16,1], index: 0, kind: input, shape index: {}]
  %s1 = inlined_call_operand.vmem [shape: f32[8,32], index: 1, kind: input, shape index: {}]
  %s2 = inlined_call_operand.vmem [shape: f32[8,32], index: 2, kind: input, shape index: {}]
  %s3 = inlined_call_operand.vmem [shape: bf16[32,128], index: 3, kind: input, shape index: {}]
  %s4 = inlined_call_operand.vmem [shape: bf16[32,128], index: 4, kind: input, shape index: {}]
  %s5 = inlined_call_operand.vmem [shape: bf16[32,16], index: 5, kind: input, shape index: {}]
  %s6 = inlined_call_operand.vmem [shape: bf16[32,16], index: 6, kind: input, shape index: {}]
  %s7 = inlined_call_operand.vmem [shape: f32[1,160], index: 7, kind: input, shape index: {}]
  %s8 = inlined_call_operand.hbm [shape: f32[8,128], index: 8, kind: output, shape index: {}]
  %s9 = sld [smem:[#allocation0]]
  $region42: #{tpu_custom_call.1} parent=0
    _
  %s11 = ssub.s32 1, %s9
  %s12 = scalar_select 0, %s11, %s9
  $region1: #{tpu_custom_call.1} parent=0
    #allocation2 [shape = 'u8[4096]{0}', space=vmem, size = 0x1000, scoped, tag = 'output window, operand 0, single buffered']
    #allocation3 [shape = 's32[1]{0}', space=sflag, size = 0x4, scoped, tag = 'scoped memory for tpu_custom_call.1']
    %13 = vsyncpa [#allocation3], 0
    // Predicated region
    $region2: #{tpu_custom_call.1} parent=1 // pred_check
      _
    $region3: #{tpu_custom_call.1} parent=1 // pred_check_branch
      %15 = sbr.rel (0) target = $region5
    $region4: #{tpu_custom_call.1} parent=1 // pred_region
      _
    $region5: #{tpu_custom_call.1} parent=1 // pred_fallthru
      _
    // Predicated region
    $region6: #{tpu_custom_call.1} parent=1 // pred_check
      _
    $region7: #{tpu_custom_call.1} parent=1 // pred_check_branch
      %17 = sbr.rel (0) target = $region9
    $region8: #{tpu_custom_call.1} parent=1 // pred_region
      _
    $region9: #{tpu_custom_call.1} parent=1 // pred_fallthru
      _
    // Predicated region
    $region10: #{tpu_custom_call.1} parent=1 // pred_check
      _
    $region11: #{tpu_custom_call.1} parent=1 // pred_check_branch
      %19 = sbr.rel (0) target = $region13
    $region12: #{tpu_custom_call.1} parent=1 // pred_region
      _
    $region13: #{tpu_custom_call.1} parent=1 // pred_fallthru
      _
    // Predicated region
    $region14: #{tpu_custom_call.1} parent=1 // pred_check
      _
    $region15: #{tpu_custom_call.1} parent=1 // pred_check_branch
      %21 = sbr.rel (0) target = $region17
    $region16: #{tpu_custom_call.1} parent=1 // pred_region
      _
    $region17: #{tpu_custom_call.1} parent=1 // pred_fallthru
      _
    // Predicated region
    $region18: #{tpu_custom_call.1} parent=1 // pred_check
      _
    $region19: #{tpu_custom_call.1} parent=1 // pred_check_branch
      %23 = sbr.rel (0) target = $region21
    $region20: #{tpu_custom_call.1} parent=1 // pred_region
      _
    $region21: #{tpu_custom_call.1} parent=1 // pred_fallthru
      _
    // Predicated region
    $region22: #{tpu_custom_call.1} parent=1 // pred_check
      _
    $region23: #{tpu_custom_call.1} parent=1 // pred_check_branch
      %25 = sbr.rel (0) target = $region25
    $region24: #{tpu_custom_call.1} parent=1 // pred_region
      _
    $region25: #{tpu_custom_call.1} parent=1 // pred_fallthru
      _
    // Predicated region
    $region26: #{tpu_custom_call.1} parent=1 // pred_check
      _
    $region27: #{tpu_custom_call.1} parent=1 // pred_check_branch
      %27 = sbr.rel (0) target = $region29
    $region28: #{tpu_custom_call.1} parent=1 // pred_region
      _
    $region29: #{tpu_custom_call.1} parent=1 // pred_fallthru
      _
    // Predicated region
    $region30: #{tpu_custom_call.1} parent=1 // pred_check
      _
    $region31: #{tpu_custom_call.1} parent=1 // pred_check_branch
      %29 = sbr.rel (0) target = $region33
    $region32: #{tpu_custom_call.1} parent=1 // pred_region
      _
    $region33: #{tpu_custom_call.1} parent=1 // pred_fallthru
      _
    %v31 = vlaneseq
    %v32 = vand.u32 %v31, 127
    %v33 = vld [vmem:[%s0] sm:$0xff]
    %v34 = vld [vmem:[%s0 + $0x8] sm:$0xff]
    %35 = vset.pattern.permute.xlu0 0
    %36 = vperm.xlu0 %35, %v33
    %v37 = vpop.permute.xlu0 %36
    %38 = vset.pattern.permute.xlu0 0
    %39 = vperm.xlu0 %38, %v34
    %v40 = vpop.permute.xlu0 %39
    %vm41 = vcmp.eq.s32.totalorder %v32, %v37
    %vm42 = vcmp.eq.s32.totalorder %v32, %v40
    %v43 = vsel %vm41, 1, 0
    %v44 = vsel %vm42, 1, 0
    %v45 = vcvt.s32.f32 %v43
    %v46 = vcvt.s32.f32 %v44
    %v47 = vpack.c.bf16 %v46, %v45
    %v48 = vld [vmem:[%s7] sm:$0x1]
    %v49 = vld [vmem:[%s3] sm:$0xf]
    %v50 = vld [vmem:[%s3 + $0x4] sm:$0xf]
    %v51 = vld [vmem:[%s3 + $0x8] sm:$0xf]
    %v52 = vld [vmem:[%s3 + $0xc] sm:$0xf]
    %v54 = vlaneseq
    %v55 = vshrl.u32 %v54, 7
    %v56 = vsub.s32 0, %v55
    %v57 = vrot.slane %v48, %v56
    %v63 = vunpack.c.l.b16 %v49
    %v64 = vunpack.c.l.b16 %v50
    %v65 = vunpack.c.l.b16 %v51
    %v66 = vunpack.c.l.b16 %v52
    %v67 = vpack.c.b16 %v64, %v63
    %v68 = vpack.c.b16 %v66, %v65
    %vm71 = vcmask 261120
    %v73 = vsel %vm71, %v47, 0
    %75 = vmatprep.subr.bf16.mxu0 0
    %76 = vmatpush1.bf16.msra.mxu0 %v67
    %77 = vmatprep.subr.bf16.mxu0 0
    %78 = vmatpush1.bf16.msra.mxu0 %v68
    %79 = vmatprep.subr.bf16.mxu0 0
    %80 = vmatpush1.bf16.msra.mxu0 0
    %81 = vmatprep.subr.bf16.mxu0 0
    %82 = vmatpush1.bf16.msra.mxu0 0
    %83 = vmatprep.subr.bf16.mxu0 0
    %84 = vmatpush1.bf16.msra.mxu0 0
    %85 = vmatprep.subr.bf16.mxu0 0
    %86 = vmatpush1.bf16.msra.mxu0 0
    %87 = vmatprep.subr.bf16.mxu0 0
    %88 = vmatpush1.bf16.msra.mxu0 0
    %89 = vmatprep.subr.bf16.mxu0 0
    %90 = vmatpush1.bf16.msra.mxu0 0
    %91 = vmatprep.subr.bf16.mxu0 0
    %92 = vmatpush1.bf16.msra.mxu0 0
    %93 = vmatprep.subr.bf16.mxu0 0
    %94 = vmatpush1.bf16.msra.mxu0 0
    %95 = vmatprep.subr.bf16.mxu0 0
    %96 = vmatpush1.bf16.msra.mxu0 0
    %97 = vmatprep.subr.bf16.mxu0 0
    %98 = vmatpush1.bf16.msra.mxu0 0
    %99 = vmatprep.subr.bf16.mxu0 0
    %100 = vmatpush1.bf16.msra.mxu0 0
    %101 = vmatprep.subr.bf16.mxu0 0
    %102 = vmatpush1.bf16.msra.mxu0 0
    %103 = vmatprep.subr.bf16.mxu0 0
    %104 = vmatpush1.bf16.msra.mxu0 0
    %105 = vmatprep.subr.bf16.mxu0 0
    %106 = vmatpush1.bf16.msra.mxu0 0
    %107 = vmatprep.mubr.bf16.mxu0 0
    %108 = vmatmul.mubr.bf16.gmra.mrb[0].mxu0 %v73
    %v109 = vpop.f32.mrb[0].mxu0
    %v110 = vadd.f32 %v57, %v109
    %v111 = vpop.f32.mrb[0].mxu0
    %v112 = vpop.f32.mrb[0].mxu0
    %v113 = vadd.f32 %v57, %v112
    %v114 = vpop.f32.mrb[0].mxu0
    %115 = vdwg.mxu0
    %v116 = vld [vmem:[%s1] sm:$0xff]
    %v117 = vld [vmem:[%s2] sm:$0xff]
    %v118 = vpack.c.bf16 %v116, %v116
    %v119 = vld [vmem:[%s4] sm:$0xf]
    %v120 = vld [vmem:[%s4 + $0x4] sm:$0xf]
    %v121 = vld [vmem:[%s4 + $0x8] sm:$0xf]
    %v122 = vld [vmem:[%s4 + $0xc] sm:$0xf]
    %v127 = vunpack.c.l.b16 %v119
    %v128 = vunpack.c.l.b16 %v120
    %v129 = vunpack.c.l.b16 %v121
    %v130 = vunpack.c.l.b16 %v122
    %v131 = vpack.c.b16 %v128, %v127
    %v132 = vpack.c.b16 %v130, %v129
    %v136 = vsel %vm71, %v118, 0
    %138 = vmatprep.subr.bf16.mxu0 0
    %139 = vmatpush1.bf16.msra.mxu0 %v131
    %140 = vmatprep.subr.bf16.mxu0 0
    %141 = vmatpush1.bf16.msra.mxu0 %v132
    %142 = vmatprep.subr.bf16.mxu0 0
    %143 = vmatpush1.bf16.msra.mxu0 0
    %144 = vmatprep.subr.bf16.mxu0 0
    %145 = vmatpush1.bf16.msra.mxu0 0
    %146 = vmatprep.subr.bf16.mxu0 0
    %147 = vmatpush1.bf16.msra.mxu0 0
    %148 = vmatprep.subr.bf16.mxu0 0
    %149 = vmatpush1.bf16.msra.mxu0 0
    %150 = vmatprep.subr.bf16.mxu0 0
    %151 = vmatpush1.bf16.msra.mxu0 0
    %152 = vmatprep.subr.bf16.mxu0 0
    %153 = vmatpush1.bf16.msra.mxu0 0
    %154 = vmatprep.subr.bf16.mxu0 0
    %155 = vmatpush1.bf16.msra.mxu0 0
    %156 = vmatprep.subr.bf16.mxu0 0
    %157 = vmatpush1.bf16.msra.mxu0 0
    %158 = vmatprep.subr.bf16.mxu0 0
    %159 = vmatpush1.bf16.msra.mxu0 0
    %160 = vmatprep.subr.bf16.mxu0 0
    %161 = vmatpush1.bf16.msra.mxu0 0
    %162 = vmatprep.subr.bf16.mxu0 0
    %163 = vmatpush1.bf16.msra.mxu0 0
    %164 = vmatprep.subr.bf16.mxu0 0
    %165 = vmatpush1.bf16.msra.mxu0 0
    %166 = vmatprep.subr.bf16.mxu0 0
    %167 = vmatpush1.bf16.msra.mxu0 0
    %168 = vmatprep.subr.bf16.mxu0 0
    %169 = vmatpush1.bf16.msra.mxu0 0
    %170 = vmatprep.mubr.bf16.mxu0 0
    %171 = vmatmul.mubr.bf16.gmra.mrb[0].mxu0 %v136
    %v172 = vpop.f32.mrb[0].mxu0
    %v173 = vadd.f32 0.0, %v172
    %v174 = vpop.f32.mrb[0].mxu0
    %v175 = vpop.f32.mrb[0].mxu0
    %v176 = vpop.f32.mrb[0].mxu0
    %177 = vdwg.mxu0
    %v178 = vadd.f32 %v110, %v173
    %v179 = vxor.u32 %v178, 2147483648
    %v180 = vmul.f32 %v179, 1.442695
    %v181 = vpow.pop %v180
    %v182 = vadd.f32 %v181, 1.0
    %v183 = vrcp.pop %v182
    %v184 = vmul.f32 1.0, %v183
    %v185 = vtanh.pop %v178
    %187 = vrot.lane.b32.xlu0 %v117, 32
    %v188 = vpop.permute.xlu0 %187
    %v190 = vmul.f32 %v184, %v188
    %192 = vrot.lane.b32.xlu0 %v185, 64
    %v193 = vpop.permute.xlu0 %192
    %v195 = vmul.f32 %v184, %v193
    %197 = vrot.lane.b32.xlu0 %v195, 32
    %v198 = vpop.permute.xlu0 %197
    %v200 = vadd.f32 %v190, %v198
    %v201 = vtanh.pop %v200
    %203 = vrot.lane.b32.xlu0 %v201, 64
    %v204 = vpop.permute.xlu0 %203
    %v206 = vmul.f32 %v184, %v204
    %v207 = vld [vmem:[%s7 + $0x1] sm:$0x1]
    %v208 = vpack.c.bf16 %v206, %v206
    %v209 = vld [vmem:[%s5] sm:$0xf]
    %v210 = vld [vmem:[%s5 + $0x4] sm:$0xf]
    %v211 = vld [vmem:[%s5 + $0x8] sm:$0xf]
    %v212 = vld [vmem:[%s5 + $0xc] sm:$0xf]
    %v214 = vlaneseq
    %v215 = vshrl.u32 %v214, 7
    %v216 = vsub.s32 0, %v215
    %v217 = vrot.slane %v207, %v216
    %220 = vrot.lane.b32.xlu0 %v208, 32
    %v221 = vpop.permute.xlu0 %220
    %v226 = vunpack.c.l.b16 %v209
    %v227 = vunpack.c.l.b16 %v210
    %v228 = vunpack.c.l.b16 %v211
    %v229 = vunpack.c.l.b16 %v212
    %v230 = vpack.c.b16 %v227, %v226
    %v231 = vpack.c.b16 %v229, %v228
    %v235 = vsel %vm71, %v221, 0
    %237 = vmatprep.subr.bf16.mxu0 0
    %238 = vmatpush1.bf16.msra.mxu0 %v230
    %239 = vmatprep.subr.bf16.mxu0 0
    %240 = vmatpush1.bf16.msra.mxu0 %v231
    %241 = vmatprep.subr.bf16.mxu0 0
    %242 = vmatpush1.bf16.msra.mxu0 0
    %243 = vmatprep.subr.bf16.mxu0 0
    %244 = vmatpush1.bf16.msra.mxu0 0
    %245 = vmatprep.subr.bf16.mxu0 0
    %246 = vmatpush1.bf16.msra.mxu0 0
    %247 = vmatprep.subr.bf16.mxu0 0
    %248 = vmatpush1.bf16.msra.mxu0 0
    %249 = vmatprep.subr.bf16.mxu0 0
    %250 = vmatpush1.bf16.msra.mxu0 0
    %251 = vmatprep.subr.bf16.mxu0 0
    %252 = vmatpush1.bf16.msra.mxu0 0
    %253 = vmatprep.subr.bf16.mxu0 0
    %254 = vmatpush1.bf16.msra.mxu0 0
    %255 = vmatprep.subr.bf16.mxu0 0
    %256 = vmatpush1.bf16.msra.mxu0 0
    %257 = vmatprep.subr.bf16.mxu0 0
    %258 = vmatpush1.bf16.msra.mxu0 0
    %259 = vmatprep.subr.bf16.mxu0 0
    %260 = vmatpush1.bf16.msra.mxu0 0
    %261 = vmatprep.subr.bf16.mxu0 0
    %262 = vmatpush1.bf16.msra.mxu0 0
    %263 = vmatprep.subr.bf16.mxu0 0
    %264 = vmatpush1.bf16.msra.mxu0 0
    %265 = vmatprep.subr.bf16.mxu0 0
    %266 = vmatpush1.bf16.msra.mxu0 0
    %267 = vmatprep.subr.bf16.mxu0 0
    %268 = vmatpush1.bf16.msra.mxu0 0
    %269 = vmatprep.mubr.bf16.mxu0 0
    %270 = vmatmul.mubr.bf16.gmra.mrb[0].mxu0 %v235
    %v271 = vpop.f32.mrb[0].mxu0
    %v272 = vadd.f32 %v217, %v271
    %v273 = vpop.f32.mrb[0].mxu0
    %v274 = vpop.f32.mrb[0].mxu0
    %v275 = vpop.f32.mrb[0].mxu0
    %276 = vdwg.mxu0
    %277 = vmatprep.subr.bf16.mxu0 0
    %278 = vmatpush1.bf16.msra.mxu0 %v131
    %279 = vmatprep.subr.bf16.mxu0 0
    %280 = vmatpush1.bf16.msra.mxu0 %v132
    %281 = vmatprep.subr.bf16.mxu0 0
    %282 = vmatpush1.bf16.msra.mxu0 0
    %283 = vmatprep.subr.bf16.mxu0 0
    %284 = vmatpush1.bf16.msra.mxu0 0
    %285 = vmatprep.subr.bf16.mxu0 0
    %286 = vmatpush1.bf16.msra.mxu0 0
    %287 = vmatprep.subr.bf16.mxu0 0
    %288 = vmatpush1.bf16.msra.mxu0 0
    %289 = vmatprep.subr.bf16.mxu0 0
    %290 = vmatpush1.bf16.msra.mxu0 0
    %291 = vmatprep.subr.bf16.mxu0 0
    %292 = vmatpush1.bf16.msra.mxu0 0
    %293 = vmatprep.subr.bf16.mxu0 0
    %294 = vmatpush1.bf16.msra.mxu0 0
    %295 = vmatprep.subr.bf16.mxu0 0
    %296 = vmatpush1.bf16.msra.mxu0 0
    %297 = vmatprep.subr.bf16.mxu0 0
    %298 = vmatpush1.bf16.msra.mxu0 0
    %299 = vmatprep.subr.bf16.mxu0 0
    %300 = vmatpush1.bf16.msra.mxu0 0
    %301 = vmatprep.subr.bf16.mxu0 0
    %302 = vmatpush1.bf16.msra.mxu0 0
    %303 = vmatprep.subr.bf16.mxu0 0
    %304 = vmatpush1.bf16.msra.mxu0 0
    %305 = vmatprep.subr.bf16.mxu0 0
    %306 = vmatpush1.bf16.msra.mxu0 0
    %307 = vmatprep.subr.bf16.mxu0 0
    %308 = vmatpush1.bf16.msra.mxu0 0
    %309 = vmatprep.mubr.bf16.mxu0 0
    %310 = vmatmul.mubr.bf16.gmra.mrb[0].mxu0 %v235
    %v311 = vpop.f32.mrb[0].mxu0
    %v312 = vadd.f32 0.0, %v311
    %v313 = vpop.f32.mrb[0].mxu0
    %v314 = vpop.f32.mrb[0].mxu0
    %v315 = vpop.f32.mrb[0].mxu0
    %316 = vdwg.mxu0
    %v317 = vadd.f32 %v113, %v312
    %v318 = vxor.u32 %v317, 2147483648
    %v319 = vmul.f32 %v318, 1.442695
    %v320 = vpow.pop %v319
    %v321 = vadd.f32 %v320, 1.0
    %v322 = vrcp.pop %v321
    %v323 = vmul.f32 1.0, %v322
    %v324 = vtanh.pop %v317
    %v325 = vmul.f32 %v323, %v200
    %327 = vrot.lane.b32.xlu0 %v324, 64
    %v328 = vpop.permute.xlu0 %327
    %v330 = vmul.f32 %v323, %v328
    %332 = vrot.lane.b32.xlu0 %v330, 32
    %v333 = vpop.permute.xlu0 %332
    %v335 = vadd.f32 %v325, %v333
    %v336 = vtanh.pop %v335
    %338 = vrot.lane.b32.xlu0 %v336, 64
    %v339 = vpop.permute.xlu0 %338
    %v341 = vmul.f32 %v323, %v339
    %v342 = vpack.c.bf16 %v341, %v341
    %v343 = vld [vmem:[%s6] sm:$0xf]
    %v344 = vld [vmem:[%s6 + $0x4] sm:$0xf]
    %v345 = vld [vmem:[%s6 + $0x8] sm:$0xf]
    %v346 = vld [vmem:[%s6 + $0xc] sm:$0xf]
    %348 = vrot.lane.b32.xlu0 %v342, 32
    %v349 = vpop.permute.xlu0 %348
    %v354 = vunpack.c.l.b16 %v343
    %v355 = vunpack.c.l.b16 %v344
    %v356 = vunpack.c.l.b16 %v345
    %v357 = vunpack.c.l.b16 %v346
    %v358 = vpack.c.b16 %v355, %v354
    %v359 = vpack.c.b16 %v357, %v356
    %362 = vrot.lane.b32.xlu0 %v217, 112
    %v363 = vpop.permute.xlu0 %362
    %v366 = vsel %vm71, %v349, 0
    %368 = vmatprep.subr.bf16.mxu0 0
    %369 = vmatpush1.bf16.msra.mxu0 %v358
    %370 = vmatprep.subr.bf16.mxu0 0
    %371 = vmatpush1.bf16.msra.mxu0 %v359
    %372 = vmatprep.subr.bf16.mxu0 0
    %373 = vmatpush1.bf16.msra.mxu0 0
    %374 = vmatprep.subr.bf16.mxu0 0
    %375 = vmatpush1.bf16.msra.mxu0 0
    %376 = vmatprep.subr.bf16.mxu0 0
    %377 = vmatpush1.bf16.msra.mxu0 0
    %378 = vmatprep.subr.bf16.mxu0 0
    %379 = vmatpush1.bf16.msra.mxu0 0
    %380 = vmatprep.subr.bf16.mxu0 0
    %381 = vmatpush1.bf16.msra.mxu0 0
    %382 = vmatprep.subr.bf16.mxu0 0
    %383 = vmatpush1.bf16.msra.mxu0 0
    %384 = vmatprep.subr.bf16.mxu0 0
    %385 = vmatpush1.bf16.msra.mxu0 0
    %386 = vmatprep.subr.bf16.mxu0 0
    %387 = vmatpush1.bf16.msra.mxu0 0
    %388 = vmatprep.subr.bf16.mxu0 0
    %389 = vmatpush1.bf16.msra.mxu0 0
    %390 = vmatprep.subr.bf16.mxu0 0
    %391 = vmatpush1.bf16.msra.mxu0 0
    %392 = vmatprep.subr.bf16.mxu0 0
    %393 = vmatpush1.bf16.msra.mxu0 0
    %394 = vmatprep.subr.bf16.mxu0 0
    %395 = vmatpush1.bf16.msra.mxu0 0
    %396 = vmatprep.subr.bf16.mxu0 0
    %397 = vmatpush1.bf16.msra.mxu0 0
    %398 = vmatprep.subr.bf16.mxu0 0
    %399 = vmatpush1.bf16.msra.mxu0 0
    %400 = vmatprep.mubr.bf16.mxu0 0
    %401 = vmatmul.mubr.bf16.gmra.mrb[0].mxu0 %v366
    %v402 = vpop.f32.mrb[0].mxu0
    %v403 = vadd.f32 %v363, %v402
    %v404 = vpop.f32.mrb[0].mxu0
    %v405 = vpop.f32.mrb[0].mxu0
    %v406 = vpop.f32.mrb[0].mxu0
    %407 = vdwg.mxu0
    %409 = vrot.lane.b32.xlu0 %v403, 16
    %v410 = vpop.permute.xlu0 %409
    %413 = vrot.lane.b32.xlu0 %v341, 64
    %v414 = vpop.permute.xlu0 %413
    %417 = vrot.lane.b32.xlu0 %v335, 32
    %v418 = vpop.permute.xlu0 %417
    %vm420 = vcmask 130048
    %v421 = vsel %vm420, %v272, %v410
    %v422 = vsel %vm71, %v421, %v414
    %vm423 = vcmask 523264
    %v424 = vsel %vm423, %v422, %v418
    %vm425 = vcmask 785408
    %v426 = vsel %vm425, %v424, 0.0
    %427 = vst [vmem:[#allocation2] sm:$0xff] %v426
    // Predicated region
    $region34: #{tpu_custom_call.1} parent=1 // pred_check
      _
    $region35: #{tpu_custom_call.1} parent=1 // pred_check_branch
      %429 = sbr.rel (0) target = $region37
    $region36: #{tpu_custom_call.1} parent=1 // pred_region
      %s431 = ssub.s32 128, 128
      %432 = vsyncadd [#allocation3], %s431
      %s434 = sshll.u32 [#allocation2], 4
      %s435 = int_to_ptr.vmem [resolvable:$true] %s434
      %437 = dma.vmem_to_hbm [thread:$0]  %s435, 128, %s8, [#allocation3]
    $region37: #{tpu_custom_call.1} parent=1 // pred_fallthru
      _
    // Predicated region
    $region38: #{tpu_custom_call.1} parent=1 // pred_check
      _
    $region39: #{tpu_custom_call.1} parent=1 // pred_check_branch
      %439 = sbr.rel (0) target = $region41
    $region40: #{tpu_custom_call.1} parent=1 // pred_region
      %440 = dma.done [#allocation3], 128
    $region41: #{tpu_custom_call.1} parent=1 // pred_fallthru
      _
    %441 = vsyncpa [#allocation3], 1

</llo_original>
